<compile_context>
chip_gen: v5e
topology: v5e:2x2
jax: 0.10.0
libtpu: 0.0.40
codegen_flags: <defaults>
</compile_context>

<pallas_src>
import functools

import numpy as np
import jax
import jax.numpy as jnp
from jax.experimental import pallas as pl
from jax.experimental.pallas import tpu as pltpu

try:  # fast C implementation if present; fall back to pure python otherwise
    from scipy.optimize import linear_sum_assignment as _scipy_lsa
except Exception:  # pragma: no cover
    _scipy_lsa = None


def _round_up(x, m):
    return ((x + m - 1) // m) * m


# ----------------------------- Pallas kernel --------------------------------

def _cost_matrix_kernel(probs_ref, onehot_t_ref, pred_ref, tgt_t_ref, out_ref,
                        *, bbox_negative, w_giou):
    # probs_ref:    (TILE_N, C_pad)   bf16  class probabilities (zero-padded classes)
    # onehot_t_ref: (C_pad, TILE_T)   bf16  (-cost_class) * one_hot(target labels)^T
    # pred_ref:     (TILE_N, 8)  f32  [|w_b|*cx, |w_b|*cy, |w_b|*w, |w_b|*h, x1, y1, x2, y2]
    # tgt_t_ref:    (8, TILE_T)  f32  same features for targets, transposed
    # out_ref:      (TILE_N, TILE_T) f32 weighted cost matrix tile

    # ---- class cost (weight + sign folded into the one-hot operand), MXU matmul ----
    acc = jnp.dot(probs_ref[...], onehot_t_ref[...],
                  preferred_element_type=jnp.float32)          # = w_class * cost_class

    pred = pred_ref[...]      # (TILE_N, 8)
    tgt = tgt_t_ref[...]      # (8, TILE_T)

    # ---- |w_bbox| * L1 cdist on cxcywh (|w_bbox| already folded into the features) ----
    l1 = (jnp.abs(pred[:, 0:1] - tgt[0:1, :])
          + jnp.abs(pred[:, 1:2] - tgt[1:2, :])
          + jnp.abs(pred[:, 2:3] - tgt[2:3, :])
          + jnp.abs(pred[:, 3:4] - tgt[3:4, :]))
    acc = (acc - l1) if bbox_negative else (acc + l1)

    # ---- cost_giou: -generalized_box_iou on precomputed xyxy ----
    px1, py1, px2, py2 = pred[:, 4:5], pred[:, 5:6], pred[:, 6:7], pred[:, 7:8]
    tx1, ty1, tx2, ty2 = tgt[4:5, :], tgt[5:6, :], tgt[6:7, :], tgt[7:8, :]

    parea = (px2 - px1) * (py2 - py1)          # (TILE_N, 1)  -- cheap rank-1 math
    tarea = (tx2 - tx1) * (ty2 - ty1)          # (1, TILE_T)

    # Hoist the (TILE_N,1)->(TILE_N,TILE_T) lane-broadcasts of the pred columns:
    # each is used twice (intersection and enclosing box) and broadcast_in_dim is
    # not CSE'd.
    tile = out_ref.shape
    px1b = jnp.broadcast_to(px1, tile)
    py1b = jnp.broadcast_to(py1, tile)
    px2b = jnp.broadcast_to(px2, tile)
    py2b = jnp.broadcast_to(py2, tile)

    # intersection / union
    iw = jnp.maximum(jnp.minimum(px2b, tx2) - jnp.maximum(px1b, tx1), 0.0)
    ih = jnp.maximum(jnp.minimum(py2b, ty2) - jnp.maximum(py1b, ty1), 0.0)
    inter = iw * ih
    union = parea + tarea - inter
    iou = inter * pl.reciprocal(union + 1e-8, approx=True)     # divide -> EUP

    # smallest enclosing box
    ew = jnp.maximum(px2b, tx2) - jnp.minimum(px1b, tx1)
    eh = jnp.maximum(py2b, ty2) - jnp.minimum(py1b, ty1)
    enc = ew * eh
    giou = iou - (enc - union) * pl.reciprocal(enc + 1e-8, approx=True)

    out_ref[...] = acc - w_giou * giou


# --------------------------- host-side wrapper -------------------------------

def _box_features(cxcywh, bbox_scale):
    """(K, 4) cxcywh -> (K, 8) [s*cx, s*cy, s*w, s*h, x1, y1, x2, y2]."""
    cxcywh = cxcywh.astype(jnp.float32)
    cx, cy, w, h = cxcywh[:, 0], cxcywh[:, 1], cxcywh[:, 2], cxcywh[:, 3]
    x1, y1 = cx - 0.5 * w, cy - 0.5 * h
    x2, y2 = cx + 0.5 * w, cy + 0.5 * h
    s = jnp.float32(bbox_scale)
    return jnp.stack([s * cx, s * cy, s * w, s * h, x1, y1, x2, y2], axis=-1)


def compute_cost_matrix(probs, pred_cxcywh, tgt_labels, tgt_cxcywh,
                        cost_class=1.0, cost_bbox=1.0, cost_giou=1.0,
                        tile_n=512, tile_t=1024):
    """probs: (N, num_classes) f32; pred_cxcywh: (N, 4) f32;
       tgt_labels: (T,) int32; tgt_cxcywh: (T, 4) f32 -> (N, T) f32 cost matrix."""
    N, num_classes = probs.shape
    T = int(tgt_cxcywh.shape[0])
    if T == 0:
        return jnp.zeros((N, 0), jnp.float32)

    # ---- tile selection ----
    C_pad = _round_up(num_classes, 128)           # lane-dense MXU K dimension
    N16 = _round_up(N, 16)                        # bf16 sublane packing
    TILE_N = min(_round_up(tile_n, 16), N16)
    # keep >= 2 parallel grid steps along N when N is big enough (v7x has 2 TCs)
    if N16 // TILE_N < 2 and N16 >= 256:
        TILE_N = _round_up((N16 + 1) // 2, 16)
    N_pad = _round_up(N, TILE_N)

    T128 = _round_up(T, 128)                      # lane-dense output / one-hot lanes
    TILE_T = min(_round_up(tile_t, 128), T128)
    T_pad = _round_up(T, TILE_T)

    # --- class-cost operands: fold (-cost_class) into the tiny one-hot operand,
    #     pad classes to a lane-dense multiple of 128, then cast to bf16 ---
    probs_p = jnp.pad(probs.astype(jnp.float32),
                      ((0, N_pad - N), (0, C_pad - num_classes)))
    probs_p = probs_p.astype(jnp.bfloat16)                                  # (N_pad, C_pad)
    onehot = jax.nn.one_hot(tgt_labels, C_pad, dtype=jnp.float32)
    onehot = onehot * jnp.float32(-float(cost_class))                       # fold -w_class
    onehot = jnp.pad(onehot, ((0, T_pad - T), (0, 0)))                      # padded cols -> 0 cost
    onehot_t = jnp.transpose(onehot).astype(jnp.bfloat16)                   # (C_pad, T_pad)

    # --- box features hoisted out of the kernel; |cost_bbox| folded into cxcywh;
    #     pad with valid positive-area dummies so padded rows/cols stay finite ---
    bbox_scale = abs(float(cost_bbox))
    dummy = jnp.array([bbox_scale * 0.5, bbox_scale * 0.5,
                       bbox_scale * 0.1, bbox_scale * 0.1,
                       0.45, 0.45, 0.55, 0.55], jnp.float32)

    pred_feat = _box_features(pred_cxcywh, bbox_scale)                      # (N, 8)
    if N_pad > N:
        pred_feat = jnp.concatenate(
            [pred_feat, jnp.broadcast_to(dummy, (N_pad - N, 8))], axis=0)

    tgt_feat = _box_features(tgt_cxcywh, bbox_scale)                        # (T, 8)
    if T_pad > T:
        tgt_feat = jnp.concatenate(
            [tgt_feat, jnp.broadcast_to(dummy, (T_pad - T, 8))], axis=0)
    tgt_feat_t = jnp.transpose(tgt_feat)                                    # (8, T_pad)

    kernel = functools.partial(_cost_matrix_kernel,
                               bbox_negative=(float(cost_bbox) < 0.0),
                               w_giou=float(cost_giou))

    grid = (N_pad // TILE_N, T_pad // TILE_T)
    out = pl.pallas_call(
        kernel,
        out_shape=jax.ShapeDtypeStruct((N_pad, T_pad), jnp.float32),
        grid=grid,
        in_specs=[
            pl.BlockSpec((TILE_N, C_pad), lambda i, j: (i, 0)),   # probs (N-tiled)
            pl.BlockSpec((C_pad, TILE_T), lambda i, j: (0, j)),   # -w_class * one-hot^T
            pl.BlockSpec((TILE_N, 8), lambda i, j: (i, 0)),       # pred feats
            pl.BlockSpec((8, TILE_T), lambda i, j: (0, j)),       # target feats^T
        ],
        out_specs=pl.BlockSpec((TILE_N, TILE_T), lambda i, j: (i, j)),
        compiler_params=pltpu.CompilerParams(
            dimension_semantics=("parallel", "parallel")),
    )(probs_p, onehot_t, pred_feat, tgt_feat_t)

    return out[:N, :T]


# ------------------- host-side linear_sum_assignment ------------------------
# TODO(synk): Hungarian assignment is sequential, data-dependent control flow with
# no clean Pallas equivalent; solved on host (scipy if available, numpy fallback).

def _lsa_fallback(cost):
    cost = np.asarray(cost, dtype=np.float64)
    transposed = False
    if cost.shape[0] > cost.shape[1]:
        cost = cost.T
        transposed = True
    n, m = cost.shape
    INF = float("inf")
    u = np.zeros(n + 1)
    v = np.zeros(m + 1)
    p = np.zeros(m + 1, dtype=np.int64)
    way = np.zeros(m + 1, dtype=np.int64)
    for i in range(1, n + 1):
        p[0] = i
        j0 = 0
        minv = np.full(m + 1, INF)
        used = np.zeros(m + 1, dtype=bool)
        while True:
            used[j0] = True
            i0 = p[j0]
            delta = INF
            j1 = -1
            for j in range(1, m + 1):
                if not used[j]:
                    cur = cost[i0 - 1, j - 1] - u[i0] - v[j]
                    if cur < minv[j]:
                        minv[j] = cur
                        way[j] = j0
                    if minv[j] < delta:
                        delta = minv[j]
                        j1 = j
            for j in range(m + 1):
                if used[j]:
                    u[p[j]] += delta
                    v[j] -= delta
                else:
                    minv[j] -= delta
            j0 = j1
            if p[j0] == 0:
                break
        while j0:
            j1 = way[j0]
            p[j0] = p[j1]
            j0 = j1
    rows, cols = [], []
    for j in range(1, m + 1):
        if p[j] != 0:
            rows.append(p[j] - 1)
            cols.append(j - 1)
    rows = np.array(rows, dtype=np.int64)
    cols = np.array(cols, dtype=np.int64)
    if transposed:
        rows, cols = cols, rows
    order = np.argsort(rows)
    return rows[order], cols[order]


def linear_sum_assignment_np(cost):
    if _scipy_lsa is not None:
        r, c = _scipy_lsa(np.asarray(cost, dtype=np.float64))
        return np.asarray(r, dtype=np.int64), np.asarray(c, dtype=np.int64)
    return _lsa_fallback(cost)


# -------------------------- HungarianMatcher wrapper ------------------------

def hungarian_matcher(class_probs, pred_cxcywh, target_labels_list,
                      target_cxcywh_list, cost_class=1.0, cost_bbox=1.0,
                      cost_giou=1.0):
    """class_probs: (bs, num_queries, num_classes); pred_cxcywh: (bs, num_queries, 4);
       targets given as per-image lists of labels (Ti,) and boxes (Ti, 4)."""
    bs, num_queries, num_classes = class_probs.shape
    N = bs * num_queries

    cat_labels = jnp.concatenate(target_labels_list, axis=0)
    cat_boxes = jnp.concatenate(target_cxcywh_list, axis=0)

    C = compute_cost_matrix(class_probs.reshape(N, num_classes),
                            pred_cxcywh.reshape(N, 4),
                            cat_labels, cat_boxes,
                            cost_class=cost_class, cost_bbox=cost_bbox,
                            cost_giou=cost_giou)
    C = jax.block_until_ready(C)
    C_np = np.asarray(C).reshape(bs, num_queries, -1)

    sizes = [int(t.shape[0]) for t in target_cxcywh_list]
    indices = []
    offset = 0
    for i, sz in enumerate(sizes):
        sub = C_np[i][:, offset:offset + sz]
        offset += sz
        row, col = linear_sum_assignment_np(sub)
        indices.append((row.astype(np.int64), col.astype(np.int64)))
    return indices, C


# ---------------------------------- demo -------------------------------------

def _reference_cost(probs, pred, labels, tgt, wc, wb, wg):
    # pure-JAX f32 reference of the cost matrix for verification
    cost_class = -probs[:, labels]
    cost_bbox = jnp.sum(jnp.abs(pred[:, None, :] - tgt[None, :, :]), axis=-1)

    def to_xyxy(b):
        cx, cy, w, h = b[..., 0], b[..., 1], b[..., 2], b[..., 3]
        return jnp.stack([cx - 0.5 * w, cy - 0.5 * h, cx + 0.5 * w, cy + 0.5 * h], -1)

    p, t = to_xyxy(pred), to_xyxy(tgt)
    pa = (p[:, 2] - p[:, 0]) * (p[:, 3] - p[:, 1])
    ta = (t[:, 2] - t[:, 0]) * (t[:, 3] - t[:, 1])
    lt = jnp.maximum(p[:, None, :2], t[None, :, :2])
    rb = jnp.minimum(p[:, None, 2:], t[None, :, 2:])
    wh = jnp.clip(rb - lt, 0.0)
    inter = wh[..., 0] * wh[..., 1]
    union = pa[:, None] + ta[None, :] - inter
    iou = inter / union
    lte = jnp.minimum(p[:, None, :2], t[None, :, :2])
    rbe = jnp.maximum(p[:, None, 2:], t[None, :, 2:])
    whe = jnp.clip(rbe - lte, 0.0)
    enc = whe[..., 0] * whe[..., 1]
    giou = iou - (enc - union) / enc
    return wb * cost_bbox + wc * cost_class + wg * (-giou)


if __name__ == "__main__":
    key = jax.random.PRNGKey(0)
    bs, num_queries, num_classes = 2, 8, 16
    sizes = [3, 5]  # targets per image

    k1, k2, k3, k4 = jax.random.split(key, 4)
    # predicted class probabilities (softmaxed) and boxes (sigmoid cxcywh)
    class_probs = jax.nn.softmax(
        jax.random.normal(k1, (bs, num_queries, num_classes), jnp.float32), axis=-1)
    pred_cxcywh = jax.nn.sigmoid(
        jax.random.normal(k2, (bs, num_queries, 4), jnp.float32))

    # ground-truth targets: labels + cxcywh boxes with positive w/h
    target_labels_list = []
    target_cxcywh_list = []
    lkeys = jax.random.split(k3, len(sizes))
    bkeys = jax.random.split(k4, len(sizes))
    for s, lk, bk in zip(sizes, lkeys, bkeys):
        target_labels_list.append(
            jax.random.randint(lk, (s,), 0, num_classes, dtype=jnp.int32))
        raw = jax.random.uniform(bk, (s, 4), jnp.float32, 0.1, 0.6)
        cxcy = raw[:, :2] + 0.2
        wh = raw[:, 2:]
        target_cxcywh_list.append(jnp.concatenate([cxcy, wh], axis=-1))

    indices, C = hungarian_matcher(class_probs, pred_cxcywh,
                                   target_labels_list, target_cxcywh_list,
                                   cost_class=1.0, cost_bbox=1.0, cost_giou=1.0)
    jax.block_until_ready(C)

    # verify kernel cost matrix against pure-JAX f32 reference
    # (loose tolerance: bf16 class matmul + approx-reciprocal divides)
    N = bs * num_queries
    ref = _reference_cost(class_probs.reshape(N, num_classes),
                          pred_cxcywh.reshape(N, 4),
                          jnp.concatenate(target_labels_list),
                          jnp.concatenate(target_cxcywh_list),
                          1.0, 1.0, 1.0)
    ref_np = np.asarray(ref)
    np.testing.assert_allclose(np.asarray(C), ref_np, rtol=2e-2, atol=2e-2)

    # verify matching quality: the assignment computed from the kernel cost matrix
    # must be (near-)optimal under the exact f32 reference cost matrix
    ref_b = ref_np.reshape(bs, num_queries, -1)
    offset = 0
    for b, (i, j) in enumerate(indices):
        sz = sizes[b]
        assert len(i) == len(j) == min(num_queries, sz)
        sub_ref = ref_b[b][:, offset:offset + sz]
        offset += sz
        r_opt, c_opt = linear_sum_assignment_np(sub_ref)
        cost_kernel_assign = float(sub_ref[i, j].sum())
        cost_opt = float(sub_ref[r_opt, c_opt].sum())
        assert cost_kernel_assign <= cost_opt + 0.1

    print("KERNEL_OK")
</pallas_src>

<mosaic_0001>
module attributes {stable_mosaic.version = 11 : i64} {
  func.func @_cost_matrix_kernel(%arg0: i32, %arg1: i32, %arg2: memref<16x128xbf16, #tpu.memory_space<vmem>>, %arg3: memref<128x128xbf16, #tpu.memory_space<vmem>>, %arg4: memref<16x8xf32, #tpu.memory_space<vmem>>, %arg5: memref<8x128xf32, #tpu.memory_space<vmem>>, %arg6: memref<16x128xf32, #tpu.memory_space<vmem>>) attributes {dimension_semantics = [#tpu.dimension_semantics<parallel>, #tpu.dimension_semantics<parallel>], iteration_bounds = array<i64: 1, 1>, scalar_prefetch = 0 : i64, scratch_operands = 0 : i64, tpu.core_type = #tpu.core_type<tc>, window_params = [{transform_indices = @transform_0, window_bounds = array<i64: 16, 128>}, {transform_indices = @transform_1, window_bounds = array<i64: 128, 128>}, {transform_indices = @transform_2, window_bounds = array<i64: 16, 8>}, {transform_indices = @transform_3, window_bounds = array<i64: 8, 128>}, {transform_indices = @transform_4, window_bounds = array<i64: 16, 128>}]} {
    %c0 = arith.constant 0 : index
    %c0_0 = arith.constant 0 : index
    %0 = vector.load %arg2[%c0, %c0_0] : memref<16x128xbf16, #tpu.memory_space<vmem>>, vector<16x128xbf16>
    %c0_1 = arith.constant 0 : index
    %c0_2 = arith.constant 0 : index
    %1 = vector.load %arg3[%c0_1, %c0_2] : memref<128x128xbf16, #tpu.memory_space<vmem>>, vector<128x128xbf16>
    %cst = arith.constant dense<0.000000e+00> : vector<16x128xf32>
    %2 = tpu.matmul %0, %1, %cst {dimension_numbers = #tpu.dot_dimension_numbers<[1], [0], [0], [1], [0, 0, 1, 1], [], []>} : vector<16x128xbf16>, vector<128x128xbf16>, vector<16x128xf32> -> vector<16x128xf32>
    %c0_3 = arith.constant 0 : index
    %c0_4 = arith.constant 0 : index
    %3 = vector.load %arg4[%c0_3, %c0_4] : memref<16x8xf32, #tpu.memory_space<vmem>>, vector<16x8xf32>
    %c0_5 = arith.constant 0 : index
    %c0_6 = arith.constant 0 : index
    %4 = vector.load %arg5[%c0_5, %c0_6] : memref<8x128xf32, #tpu.memory_space<vmem>>, vector<8x128xf32>
    %5 = vector.extract_strided_slice %3 {offsets = [0, 0], sizes = [16, 1], strides = [1, 1]} : vector<16x8xf32> to vector<16x1xf32>
    %6 = vector.extract_strided_slice %4 {offsets = [0, 0], sizes = [1, 128], strides = [1, 1]} : vector<8x128xf32> to vector<1x128xf32>
    %7 = vector.broadcast %5 : vector<16x1xf32> to vector<16x128xf32>
    %8 = vector.broadcast %6 : vector<1x128xf32> to vector<16x128xf32>
    %9 = arith.subf %7, %8 : vector<16x128xf32>
    %10 = math.absf %9 : vector<16x128xf32>
    %11 = vector.extract_strided_slice %3 {offsets = [0, 1], sizes = [16, 1], strides = [1, 1]} : vector<16x8xf32> to vector<16x1xf32>
    %12 = vector.extract_strided_slice %4 {offsets = [1, 0], sizes = [1, 128], strides = [1, 1]} : vector<8x128xf32> to vector<1x128xf32>
    %13 = vector.broadcast %11 : vector<16x1xf32> to vector<16x128xf32>
    %14 = vector.broadcast %12 : vector<1x128xf32> to vector<16x128xf32>
    %15 = arith.subf %13, %14 : vector<16x128xf32>
    %16 = math.absf %15 : vector<16x128xf32>
    %17 = arith.addf %10, %16 : vector<16x128xf32>
    %18 = vector.extract_strided_slice %3 {offsets = [0, 2], sizes = [16, 1], strides = [1, 1]} : vector<16x8xf32> to vector<16x1xf32>
    %19 = vector.extract_strided_slice %4 {offsets = [2, 0], sizes = [1, 128], strides = [1, 1]} : vector<8x128xf32> to vector<1x128xf32>
    %20 = vector.broadcast %18 : vector<16x1xf32> to vector<16x128xf32>
    %21 = vector.broadcast %19 : vector<1x128xf32> to vector<16x128xf32>
    %22 = arith.subf %20, %21 : vector<16x128xf32>
    %23 = math.absf %22 : vector<16x128xf32>
    %24 = arith.addf %17, %23 : vector<16x128xf32>
    %25 = vector.extract_strided_slice %3 {offsets = [0, 3], sizes = [16, 1], strides = [1, 1]} : vector<16x8xf32> to vector<16x1xf32>
    %26 = vector.extract_strided_slice %4 {offsets = [3, 0], sizes = [1, 128], strides = [1, 1]} : vector<8x128xf32> to vector<1x128xf32>
    %27 = vector.broadcast %25 : vector<16x1xf32> to vector<16x128xf32>
    %28 = vector.broadcast %26 : vector<1x128xf32> to vector<16x128xf32>
    %29 = arith.subf %27, %28 : vector<16x128xf32>
    %30 = math.absf %29 : vector<16x128xf32>
    %31 = arith.addf %24, %30 : vector<16x128xf32>
    %32 = arith.addf %2, %31 : vector<16x128xf32>
    %33 = vector.extract_strided_slice %3 {offsets = [0, 4], sizes = [16, 1], strides = [1, 1]} : vector<16x8xf32> to vector<16x1xf32>
    %34 = vector.extract_strided_slice %3 {offsets = [0, 5], sizes = [16, 1], strides = [1, 1]} : vector<16x8xf32> to vector<16x1xf32>
    %35 = vector.extract_strided_slice %3 {offsets = [0, 6], sizes = [16, 1], strides = [1, 1]} : vector<16x8xf32> to vector<16x1xf32>
    %36 = vector.extract_strided_slice %3 {offsets = [0, 7], sizes = [16, 1], strides = [1, 1]} : vector<16x8xf32> to vector<16x1xf32>
    %37 = vector.extract_strided_slice %4 {offsets = [4, 0], sizes = [1, 128], strides = [1, 1]} : vector<8x128xf32> to vector<1x128xf32>
    %38 = vector.extract_strided_slice %4 {offsets = [5, 0], sizes = [1, 128], strides = [1, 1]} : vector<8x128xf32> to vector<1x128xf32>
    %39 = vector.extract_strided_slice %4 {offsets = [6, 0], sizes = [1, 128], strides = [1, 1]} : vector<8x128xf32> to vector<1x128xf32>
    %40 = vector.extract_strided_slice %4 {offsets = [7, 0], sizes = [1, 128], strides = [1, 1]} : vector<8x128xf32> to vector<1x128xf32>
    %41 = arith.subf %35, %33 : vector<16x1xf32>
    %42 = arith.subf %36, %34 : vector<16x1xf32>
    %43 = arith.mulf %41, %42 : vector<16x1xf32>
    %44 = arith.subf %39, %37 : vector<1x128xf32>
    %45 = arith.subf %40, %38 : vector<1x128xf32>
    %46 = arith.mulf %44, %45 : vector<1x128xf32>
    %47 = vector.shape_cast %33 : vector<16x1xf32> to vector<16x1xf32>
    %48 = vector.broadcast %47 : vector<16x1xf32> to vector<16x128xf32>
    %49 = vector.shape_cast %34 : vector<16x1xf32> to vector<16x1xf32>
    %50 = vector.broadcast %49 : vector<16x1xf32> to vector<16x128xf32>
    %51 = vector.shape_cast %35 : vector<16x1xf32> to vector<16x1xf32>
    %52 = vector.broadcast %51 : vector<16x1xf32> to vector<16x128xf32>
    %53 = vector.shape_cast %36 : vector<16x1xf32> to vector<16x1xf32>
    %54 = vector.broadcast %53 : vector<16x1xf32> to vector<16x128xf32>
    %55 = vector.broadcast %39 : vector<1x128xf32> to vector<16x128xf32>
    %56 = arith.minimumf %52, %55 : vector<16x128xf32>
    %57 = vector.broadcast %37 : vector<1x128xf32> to vector<16x128xf32>
    %58 = arith.maximumf %48, %57 : vector<16x128xf32>
    %59 = arith.subf %56, %58 : vector<16x128xf32>
    %cst_7 = arith.constant 0.000000e+00 : f32
    %60 = vector.broadcast %cst_7 : f32 to vector<16x128xf32>
    %61 = arith.maximumf %59, %60 : vector<16x128xf32>
    %62 = vector.broadcast %40 : vector<1x128xf32> to vector<16x128xf32>
    %63 = arith.minimumf %54, %62 : vector<16x128xf32>
    %64 = vector.broadcast %38 : vector<1x128xf32> to vector<16x128xf32>
    %65 = arith.maximumf %50, %64 : vector<16x128xf32>
    %66 = arith.subf %63, %65 : vector<16x128xf32>
    %cst_8 = arith.constant 0.000000e+00 : f32
    %67 = vector.broadcast %cst_8 : f32 to vector<16x128xf32>
    %68 = arith.maximumf %66, %67 : vector<16x128xf32>
    %69 = arith.mulf %61, %68 : vector<16x128xf32>
    %70 = vector.broadcast %43 : vector<16x1xf32> to vector<16x128xf32>
    %71 = vector.broadcast %46 : vector<1x128xf32> to vector<16x128xf32>
    %72 = arith.addf %70, %71 : vector<16x128xf32>
    %73 = arith.subf %72, %69 : vector<16x128xf32>
    %cst_9 = arith.constant 9.99999993E-9 : f32
    %74 = vector.broadcast %cst_9 : f32 to vector<16x128xf32>
    %75 = arith.addf %73, %74 : vector<16x128xf32>
    %76 = tpu.reciprocal %75 {approx = true} : vector<16x128xf32> -> vector<16x128xf32>
    %77 = arith.mulf %69, %76 : vector<16x128xf32>
    %78 = vector.broadcast %39 : vector<1x128xf32> to vector<16x128xf32>
    %79 = arith.maximumf %52, %78 : vector<16x128xf32>
    %80 = vector.broadcast %37 : vector<1x128xf32> to vector<16x128xf32>
    %81 = arith.minimumf %48, %80 : vector<16x128xf32>
    %82 = arith.subf %79, %81 : vector<16x128xf32>
    %83 = vector.broadcast %40 : vector<1x128xf32> to vector<16x128xf32>
    %84 = arith.maximumf %54, %83 : vector<16x128xf32>
    %85 = vector.broadcast %38 : vector<1x128xf32> to vector<16x128xf32>
    %86 = arith.minimumf %50, %85 : vector<16x128xf32>
    %87 = arith.subf %84, %86 : vector<16x128xf32>
    %88 = arith.mulf %82, %87 : vector<16x128xf32>
    %89 = arith.subf %88, %73 : vector<16x128xf32>
    %cst_10 = arith.constant 9.99999993E-9 : f32
    %90 = vector.broadcast %cst_10 : f32 to vector<16x128xf32>
    %91 = arith.addf %88, %90 : vector<16x128xf32>
    %92 = tpu.reciprocal %91 {approx = true} : vector<16x128xf32> -> vector<16x128xf32>
    %93 = arith.mulf %89, %92 : vector<16x128xf32>
    %94 = arith.subf %77, %93 : vector<16x128xf32>
    %cst_11 = arith.constant 1.000000e+00 : f32
    %95 = vector.broadcast %cst_11 : f32 to vector<16x128xf32>
    %96 = arith.mulf %95, %94 : vector<16x128xf32>
    %97 = arith.subf %32, %96 : vector<16x128xf32>
    %c0_12 = arith.constant 0 : index
    %c0_13 = arith.constant 0 : index
    %98 = vector.load %arg6[%c0_12, %c0_13] : memref<16x128xf32, #tpu.memory_space<vmem>>, vector<16x128xf32>
    tpu.vector_store %arg6[%c0_12, %c0_13], %97 {strides = array<i32>} : memref<16x128xf32, #tpu.memory_space<vmem>>, vector<16x128xf32>,
    return
  }
  func.func @transform_0(%arg0: i32, %arg1: i32) -> (i32, i32) {
    %c0_i32 = arith.constant 0 : i32
    %c0_i32_0 = arith.constant 0 : i32
    return %arg0, %c0_i32 : i32, i32
  }
  func.func @transform_1(%arg0: i32, %arg1: i32) -> (i32, i32) {
    %c0_i32 = arith.constant 0 : i32
    %c0_i32_0 = arith.constant 0 : i32
    return %c0_i32, %arg1 : i32, i32
  }
  func.func @transform_2(%arg0: i32, %arg1: i32) -> (i32, i32) {
    %c0_i32 = arith.constant 0 : i32
    %c0_i32_0 = arith.constant 0 : i32
    return %arg0, %c0_i32 : i32, i32
  }
  func.func @transform_3(%arg0: i32, %arg1: i32) -> (i32, i32) {
    %c0_i32 = arith.constant 0 : i32
    %c0_i32_0 = arith.constant 0 : i32
    return %c0_i32, %arg1 : i32, i32
  }
  func.func @transform_4(%arg0: i32, %arg1: i32) -> (i32, i32) {
    %c0_i32 = arith.constant 0 : i32
    return %arg0, %arg1 : i32, i32
  }
}

</mosaic_0001>

<llo_original>
// kernel: tpu_custom_call.1
$region0: #{tpu_custom_call.1}
  #allocation0 [shape = 'u32[]', space=smem, size = 0x4, offset = 0x4, fixed_abs, tag = 'smem constant byte address 0x4 - core index']
  #allocation1 [shape = 'u32[72,128]{1,0:T(1,128)}', space=vmem, size = 0x9000, scoped, tag = 'internal scratch']
  %s0 = inlined_call_operand.vmem [shape: bf16[16,128], index: 0, kind: input, shape index: {}]
  %s1 = inlined_call_operand.hbm [shape: bf16[128,128], index: 1, kind: input, shape index: {}]
  %s2 = inlined_call_operand.vmem [shape: f32[16,8], index: 2, kind: input, shape index: {}]
  %s3 = inlined_call_operand.vmem [shape: f32[8,128], index: 3, kind: input, shape index: {}]
  %s4 = inlined_call_operand.hbm [shape: f32[16,128], index: 4, kind: output, shape index: {}]
  %s5 = sld [smem:[#allocation0]]
  $region30: #{tpu_custom_call.1} parent=0
    _
  %s7 = ssub.s32 1, %s5
  %s8 = scalar_select 0, %s7, %s5
  $region1: #{tpu_custom_call.1} parent=0
    #allocation2 [shape = 'u8[32768]{0}', space=vmem, size = 0x8000, scoped, tag = 'input window, operand 1, single buffered']
    #allocation3 [shape = 's32[1]{0}', space=sflag, size = 0x4, scoped, tag = 'scoped memory for tpu_custom_call.1']
    #allocation4 [shape = 's32[1]{0}', space=sflag, size = 0x4, scoped, tag = 'scoped memory for tpu_custom_call.1']
    #allocation5 [shape = 'u8[8192]{0}', space=vmem, size = 0x2000, scoped, tag = 'output window, operand 0, single buffered']
    %9 = vsyncpa [#allocation3], 0
    %10 = vsyncpa [#allocation4], 0
    // Predicated region
    $region2: #{tpu_custom_call.1} parent=1 // pred_check
      _
    $region3: #{tpu_custom_call.1} parent=1 // pred_check_branch
      %12 = sbr.rel (0) target = $region5
    $region4: #{tpu_custom_call.1} parent=1 // pred_region
      _
    $region5: #{tpu_custom_call.1} parent=1 // pred_fallthru
      _
    // Predicated region
    $region6: #{tpu_custom_call.1} parent=1 // pred_check
      _
    $region7: #{tpu_custom_call.1} parent=1 // pred_check_branch
      %14 = sbr.rel (0) target = $region9
    $region8: #{tpu_custom_call.1} parent=1 // pred_region
      %16 = vsyncadd [#allocation3], 0
      %s17 = sshll.u32 %s1, 4
      %s18 = int_to_ptr.hbm [resolvable:$true] %s17
      %s19 = sshll.u32 [#allocation2], 4
      %s20 = int_to_ptr.vmem [resolvable:$true] %s19
      %25 = dma.hbm_to_vmem [thread:$0]  %s18, 1024, %s20, [#allocation3], 64, 64, 4
    $region9: #{tpu_custom_call.1} parent=1 // pred_fallthru
      _
    // Predicated region
    $region10: #{tpu_custom_call.1} parent=1 // pred_check
      _
    $region11: #{tpu_custom_call.1} parent=1 // pred_check_branch
      %27 = sbr.rel (0) target = $region13
    $region12: #{tpu_custom_call.1} parent=1 // pred_region
      _
    $region13: #{tpu_custom_call.1} parent=1 // pred_fallthru
      _
    // Predicated region
    $region14: #{tpu_custom_call.1} parent=1 // pred_check
      _
    $region15: #{tpu_custom_call.1} parent=1 // pred_check_branch
      %29 = sbr.rel (0) target = $region17
    $region16: #{tpu_custom_call.1} parent=1 // pred_region
      _
    $region17: #{tpu_custom_call.1} parent=1 // pred_fallthru
      _
    // Predicated region
    $region18: #{tpu_custom_call.1} parent=1 // pred_check
      _
    $region19: #{tpu_custom_call.1} parent=1 // pred_check_branch
      %31 = sbr.rel (0) target = $region21
    $region20: #{tpu_custom_call.1} parent=1 // pred_region
      %33 = dma.done [#allocation3], 1024
    $region21: #{tpu_custom_call.1} parent=1 // pred_fallthru
      _
    %v34 = vld [vmem:[%s0] sm:$0xf]
    %v35 = vld [vmem:[%s0 + $0x4] sm:$0xf]
    %v36 = vld [vmem:[#allocation2] sm:$0xf]
    %v37 = vld [vmem:[#allocation2 + $0x4] sm:$0xf]
    %v38 = vld [vmem:[#allocation2 + $0x8] sm:$0xf]
    %v39 = vld [vmem:[#allocation2 + $0xc] sm:$0xf]
    %v40 = vld [vmem:[#allocation2 + $0x10] sm:$0xf]
    %v41 = vld [vmem:[#allocation2 + $0x14] sm:$0xf]
    %v42 = vld [vmem:[#allocation2 + $0x18] sm:$0xf]
    %v43 = vld [vmem:[#allocation2 + $0x1c] sm:$0xf]
    %v44 = vld [vmem:[#allocation2 + $0x20] sm:$0xf]
    %v45 = vld [vmem:[#allocation2 + $0x24] sm:$0xf]
    %v46 = vld [vmem:[#allocation2 + $0x28] sm:$0xf]
    %v47 = vld [vmem:[#allocation2 + $0x2c] sm:$0xf]
    %v48 = vld [vmem:[#allocation2 + $0x30] sm:$0xf]
    %v49 = vld [vmem:[#allocation2 + $0x34] sm:$0xf]
    %v50 = vld [vmem:[#allocation2 + $0x38] sm:$0xf]
    %v51 = vld [vmem:[#allocation2 + $0x3c] sm:$0xf]
    %v52 = vld [vmem:[%s2] sm:$0xff]
    %v53 = vld [vmem:[%s2 + $0x8] sm:$0xff]
    %v54 = vld [vmem:[%s3] sm:$0xff]
    %56 = vset.pattern.permute.xlu0 0
    %57 = vperm.xlu0 %56, %v52
    %v58 = vpop.permute.xlu0 %57
    %61 = vset.pattern.permute.xlu0 0
    %62 = vperm.xlu0 %61, %v53
    %v63 = vpop.permute.xlu0 %62
    %v65 = vperm.slane %v54, 0
    %v66 = vsub.f32 %v58, %v65
    %v67 = vsub.f32 %v63, %v65
    %v68 = vand.u32 2147483647, %v66
    %v69 = vand.u32 2147483647, %v67
    %70 = vset.pattern.permute.xlu0 1
    %71 = vperm.xlu0 %70, %v52
    %v72 = vpop.permute.xlu0 %71
    %74 = vset.pattern.permute.xlu0 1
    %75 = vperm.xlu0 %74, %v53
    %v76 = vpop.permute.xlu0 %75
    %v78 = vperm.slane %v54, 1
    %v79 = vsub.f32 %v72, %v78
    %v80 = vsub.f32 %v76, %v78
    %v81 = vand.u32 2147483647, %v79
    %v82 = vand.u32 2147483647, %v80
    %v83 = vadd.f32 %v68, %v81
    %v84 = vadd.f32 %v69, %v82
    %85 = vset.pattern.permute.xlu0 2
    %86 = vperm.xlu0 %85, %v52
    %v87 = vpop.permute.xlu0 %86
    %89 = vset.pattern.permute.xlu0 2
    %90 = vperm.xlu0 %89, %v53
    %v91 = vpop.permute.xlu0 %90
    %v93 = vperm.slane %v54, 2
    %v94 = vsub.f32 %v87, %v93
    %v95 = vsub.f32 %v91, %v93
    %v96 = vand.u32 2147483647, %v94
    %v97 = vand.u32 2147483647, %v95
    %v98 = vadd.f32 %v83, %v96
    %v99 = vadd.f32 %v84, %v97
    %100 = vset.pattern.permute.xlu0 3
    %101 = vperm.xlu0 %100, %v52
    %v102 = vpop.permute.xlu0 %101
    %104 = vset.pattern.permute.xlu0 3
    %105 = vperm.xlu0 %104, %v53
    %v106 = vpop.permute.xlu0 %105
    %v108 = vperm.slane %v54, 3
    %v109 = vsub.f32 %v102, %v108
    %v110 = vsub.f32 %v106, %v108
    %v111 = vand.u32 2147483647, %v109
    %v112 = vand.u32 2147483647, %v110
    %v113 = vadd.f32 %v98, %v111
    %v114 = vadd.f32 %v99, %v112
    %v117 = vunpack.c.l.b16 %v34
    %v118 = vunpack.c.l.b16 %v35
    %v119 = vpack.c.b16 %v118, %v117
    %v137 = vunpack.c.l.b16 %v36
    %v138 = vunpack.c.l.b16 %v37
    %v139 = vunpack.c.l.b16 %v38
    %v140 = vunpack.c.l.b16 %v39
    %v141 = vunpack.c.l.b16 %v40
    %v142 = vunpack.c.l.b16 %v41
    %v143 = vunpack.c.l.b16 %v42
    %v144 = vunpack.c.l.b16 %v43
    %v145 = vunpack.c.l.b16 %v44
    %v146 = vunpack.c.l.b16 %v45
    %v147 = vunpack.c.l.b16 %v46
    %v148 = vunpack.c.l.b16 %v47
    %v149 = vunpack.c.l.b16 %v48
    %v150 = vunpack.c.l.b16 %v49
    %v151 = vunpack.c.l.b16 %v50
    %v152 = vunpack.c.l.b16 %v51
    %v153 = vpack.c.b16 %v138, %v137
    %v154 = vpack.c.b16 %v140, %v139
    %v155 = vpack.c.b16 %v142, %v141
    %v156 = vpack.c.b16 %v144, %v143
    %v157 = vpack.c.b16 %v146, %v145
    %v158 = vpack.c.b16 %v148, %v147
    %v159 = vpack.c.b16 %v150, %v149
    %v160 = vpack.c.b16 %v152, %v151
    %169 = vmatpush.bf16.msra.mxu0 %v160
    %170 = vmatpush.bf16.msra.mxu0 %v159
    %171 = vmatpush.bf16.msra.mxu0 %v158
    %172 = vmatpush.bf16.msra.mxu0 %v157
    %173 = vmatpush.bf16.msra.mxu0 %v156
    %174 = vmatpush.bf16.msra.mxu0 %v155
    %175 = vmatpush.bf16.msra.mxu0 %v154
    %176 = vmatpush.bf16.msra.mxu0 %v153
    %177 = vmatmul.bf16.gmra.mxu0 %v119
    %v178 = vpop.f32.mrf.mxu0
    %v179 = vadd.f32 %v113, %v178
    %v180 = vpop.f32.mrf.mxu0
    %v181 = vadd.f32 %v114, %v180
    %182 = vdwg.mxu0
    %183 = vrot.lane.b32.xlu0 %v52, 2
    %v184 = vpop.permute.xlu0 %183
    %185 = vrot.lane.b32.xlu0 %v53, 2
    %v186 = vpop.permute.xlu0 %185
    %v189 = vsub.f32 %v52, %v184
    %v190 = vsub.f32 %v53, %v186
    %193 = vrot.lane.b32.xlu0 %v189, 127
    %v194 = vpop.permute.xlu0 %193
    %195 = vrot.lane.b32.xlu0 %v190, 127
    %v196 = vpop.permute.xlu0 %195
    %v199 = vmul.f32 %v189, %v194
    %v200 = vmul.f32 %v190, %v196
    %v202 = vrot.slane %v54, 6
    %v204 = vsub.f32 %v54, %v202
    %v206 = vrot.slane %v204, 1
    %v208 = vmul.f32 %v204, %v206
    %209 = vset.pattern.permute.xlu0 4
    %210 = vperm.xlu0 %209, %v52
    %v211 = vpop.permute.xlu0 %210
    %213 = vset.pattern.permute.xlu0 4
    %214 = vperm.xlu0 %213, %v53
    %v215 = vpop.permute.xlu0 %214
    %217 = vset.pattern.permute.xlu0 5
    %218 = vperm.xlu0 %217, %v52
    %v219 = vpop.permute.xlu0 %218
    %221 = vset.pattern.permute.xlu0 5
    %222 = vperm.xlu0 %221, %v53
    %v223 = vpop.permute.xlu0 %222
    %225 = vset.pattern.permute.xlu0 6
    %226 = vperm.xlu0 %225, %v52
    %v227 = vpop.permute.xlu0 %226
    %229 = vset.pattern.permute.xlu0 6
    %230 = vperm.xlu0 %229, %v53
    %v231 = vpop.permute.xlu0 %230
    %233 = vset.pattern.permute.xlu0 7
    %234 = vperm.xlu0 %233, %v52
    %v235 = vpop.permute.xlu0 %234
    %237 = vset.pattern.permute.xlu0 7
    %238 = vperm.xlu0 %237, %v53
    %v239 = vpop.permute.xlu0 %238
    %v241 = vperm.slane %v54, 6
    %v242 = vmin.f32 %v227, %v241
    %v243 = vmin.f32 %v231, %v241
    %v244 = vperm.slane %v54, 4
    %v245 = vmax.f32 %v211, %v244
    %v246 = vmax.f32 %v215, %v244
    %v247 = vsub.f32 %v242, %v245
    %v248 = vsub.f32 %v243, %v246
    %v249 = vmax.f32 %v247, 0.0
    %v250 = vmax.f32 %v248, 0.0
    %v251 = vperm.slane %v54, 7
    %v252 = vmin.f32 %v235, %v251
    %v253 = vmin.f32 %v239, %v251
    %v254 = vperm.slane %v54, 5
    %v255 = vmax.f32 %v219, %v254
    %v256 = vmax.f32 %v223, %v254
    %v257 = vsub.f32 %v252, %v255
    %v258 = vsub.f32 %v253, %v256
    %v259 = vmax.f32 %v257, 0.0
    %v260 = vmax.f32 %v258, 0.0
    %v261 = vmul.f32 %v249, %v259
    %v262 = vmul.f32 %v250, %v260
    %264 = vset.pattern.permute.xlu0 6
    %265 = vperm.xlu0 %264, %v199
    %v266 = vpop.permute.xlu0 %265
    %269 = vset.pattern.permute.xlu0 6
    %270 = vperm.xlu0 %269, %v200
    %v271 = vpop.permute.xlu0 %270
    %v273 = vperm.slane %v208, 6
    %v274 = vadd.f32 %v266, %v273
    %v275 = vadd.f32 %v271, %v273
    %v276 = vsub.f32 %v274, %v261
    %v277 = vsub.f32 %v275, %v262
    %v278 = vadd.f32 %v276, 1e-08
    %v279 = vadd.f32 %v277, 1e-08
    %v280 = vrcp.pop %v278
    %v281 = vrcp.pop %v279
    %v282 = vmul.f32 %v261, %v280
    %v283 = vmul.f32 %v262, %v281
    %v284 = vmax.f32 %v227, %v241
    %v285 = vmax.f32 %v231, %v241
    %v286 = vmin.f32 %v211, %v244
    %v287 = vmin.f32 %v215, %v244
    %v288 = vsub.f32 %v284, %v286
    %v289 = vsub.f32 %v285, %v287
    %v290 = vmax.f32 %v235, %v251
    %v291 = vmax.f32 %v239, %v251
    %v292 = vmin.f32 %v219, %v254
    %v293 = vmin.f32 %v223, %v254
    %v294 = vsub.f32 %v290, %v292
    %v295 = vsub.f32 %v291, %v293
    %v296 = vmul.f32 %v288, %v294
    %v297 = vmul.f32 %v289, %v295
    %v298 = vsub.f32 %v296, %v276
    %v299 = vsub.f32 %v297, %v277
    %v300 = vadd.f32 %v296, 1e-08
    %v301 = vadd.f32 %v297, 1e-08
    %v302 = vrcp.pop %v300
    %v303 = vrcp.pop %v301
    %v304 = vmul.f32 %v298, %v302
    %v305 = vmul.f32 %v299, %v303
    %v306 = vsub.f32 %v282, %v304
    %v307 = vsub.f32 %v283, %v305
    %v308 = vsub.f32 %v179, %v306
    %v309 = vsub.f32 %v181, %v307
    %310 = vst [vmem:[#allocation5] sm:$0xff] %v308
    %311 = vst [vmem:[#allocation5 + $0x8] sm:$0xff] %v309
    // Predicated region
    $region22: #{tpu_custom_call.1} parent=1 // pred_check
      _
    $region23: #{tpu_custom_call.1} parent=1 // pred_check_branch
      %313 = sbr.rel (0) target = $region25
    $region24: #{tpu_custom_call.1} parent=1 // pred_region
      %315 = vsyncadd [#allocation4], 0
      %s316 = sshll.u32 [#allocation5], 4
      %s317 = int_to_ptr.vmem [resolvable:$true] %s316
      %s318 = sshll.u32 %s4, 4
      %s319 = int_to_ptr.hbm [resolvable:$true] %s318
      %324 = dma.vmem_to_hbm [thread:$0]  %s317, 256, %s319, [#allocation4], 128, 128, 8
    $region25: #{tpu_custom_call.1} parent=1 // pred_fallthru
      _
    // Predicated region
    $region26: #{tpu_custom_call.1} parent=1 // pred_check
      _
    $region27: #{tpu_custom_call.1} parent=1 // pred_check_branch
      %326 = sbr.rel (0) target = $region29
    $region28: #{tpu_custom_call.1} parent=1 // pred_region
      %328 = dma.done [#allocation4], 256
    $region29: #{tpu_custom_call.1} parent=1 // pred_fallthru
      _
    %329 = vsyncpa [#allocation3], 1
    %330 = vsyncpa [#allocation4], 1

</llo_original>
